<compile_context>
chip_gen: v5e
topology: v5e:2x2
jax: 0.10.0
libtpu: 0.0.40
codegen_flags: <defaults>
</compile_context>

<pallas_src>
import itertools
import numpy as np
import jax
import jax.numpy as jnp
from jax.experimental import pallas as pl
from jax.experimental.pallas import tpu as pltpu

N_IN = 4                    # number of input variables (invardefs)
N_MFS = 3                   # Gaussian MFs per variable (n_terms)
N_RULES = N_MFS ** N_IN     # 81 rules (itertools.product of MF indices)
N_OUT = 2                   # number of output variables
BATCH = 16
B_TILE = BATCH              # whole batch in a single grid step (grid=(1,))

F_PAD = 128                 # padded n_in * n_mfs (lane axis)
R_PAD = 128                 # padded number of rules (one MXU weight tile)
O_PAD = 128                 # padded number of outputs (lane-dense store)


def anfis_kernel(x_ref, rep_ref, mu_ref, inv2s2_ref, sel_ref, mask_ref,
                 coeff_ref, o_ref):
    x = x_ref[...]                                              # (Bt, n_in)
    # Replicate each input value into its variable's MF lanes: (Bt, F_PAD).
    x_rep = jnp.dot(x, rep_ref[...], preferred_element_type=jnp.float32)

    # FuzzifyLayer in log-space: log GaussMF = -(x-mu)^2 / (2 sigma^2).
    # inv2s2 is prefolded; padded lanes have inv2s2 = 0 -> logfuzz = 0 there
    # (harmless: the selector has all-zero rows for padded lanes).
    diff = x_rep - mu_ref[...]
    logfuzz = -(diff * diff) * inv2s2_ref[...]                  # (Bt, F_PAD)

    # AntecedentLayer fused with fuzzify: fire strength
    #   raw[b,r] = prod_i fuzz[b, sel_i(r)] = exp(sum_i logfuzz[b, sel_i(r)])
    # via a single (F_PAD x R_PAD) 0/1 summed-selector matmul.  Padded rule
    # columns of the selector are all-zero -> exp(0)=1 there, killed by mask.
    logits = jnp.dot(logfuzz, sel_ref[...],
                     preferred_element_type=jnp.float32)        # (Bt, R_PAD)
    raw = jnp.exp(logits) * mask_ref[...]

    # F.normalize(raw_weights, p=1, dim=1)  (torch default eps = 1e-12)
    denom = jnp.maximum(jnp.sum(jnp.abs(raw), axis=1, keepdims=True), 1e-12)
    w = raw * pl.reciprocal(denom)                              # exact reciprocal (EUP)

    # ConsequentLayer + bmm: y[b, o] = sum_r coeff[r, o] * w[b, r]
    o_ref[...] = jnp.dot(w, coeff_ref[...], preferred_element_type=jnp.float32)


def anfis_forward(x, mu, sigma, mf_idx, coeff):
    """x:(B,n_in)  mu,sigma:(n_in,n_mfs)  mf_idx:(n_rules,n_in)  coeff:(n_rules,n_out)"""
    B, n_in = x.shape
    n_mfs = mu.shape[1]
    n_rules, n_out = coeff.shape

    mf_idx_np = np.asarray(mf_idx)
    mu_np, sig_np = np.asarray(mu), np.asarray(sigma)

    # Glue: build padded, lane-dense parameter tensors (plain numpy, done once).
    rep = np.zeros((n_in, F_PAD), np.float32)         # value -> MF-lane replicator
    mu_flat = np.zeros((1, F_PAD), np.float32)
    inv2s2 = np.zeros((1, F_PAD), np.float32)         # 1/(2*sigma^2); 0 on padded lanes
    sel = np.zeros((F_PAD, R_PAD), np.float32)        # summed one-hot rule selector
    rule_mask = np.zeros((1, R_PAD), np.float32)      # 1 for real rules, 0 for padding
    coeff_pad = np.zeros((R_PAD, O_PAD), np.float32)
    for i in range(n_in):
        lo = i * n_mfs
        rep[i, lo:lo + n_mfs] = 1.0
        mu_flat[0, lo:lo + n_mfs] = mu_np[i]
        inv2s2[0, lo:lo + n_mfs] = 1.0 / (2.0 * sig_np[i] ** 2)
        sel[lo + mf_idx_np[:, i], np.arange(n_rules)] += 1.0   # disjoint lane ranges per var
    rule_mask[0, :n_rules] = 1.0
    coeff_pad[:n_rules, :n_out] = np.asarray(coeff)

    out = pl.pallas_call(
        anfis_kernel,
        out_shape=jax.ShapeDtypeStruct((B, O_PAD), jnp.float32),
        grid=(B // B_TILE,),
        in_specs=[
            pl.BlockSpec((B_TILE, n_in), lambda b: (b, 0)),       # x tile
            pl.BlockSpec((n_in, F_PAD), lambda b: (0, 0)),        # replicator
            pl.BlockSpec((1, F_PAD), lambda b: (0, 0)),           # mu
            pl.BlockSpec((1, F_PAD), lambda b: (0, 0)),           # 1/(2*sigma^2)
            pl.BlockSpec((F_PAD, R_PAD), lambda b: (0, 0)),       # fused rule selector
            pl.BlockSpec((1, R_PAD), lambda b: (0, 0)),           # rule validity mask
            pl.BlockSpec((R_PAD, O_PAD), lambda b: (0, 0)),       # consequent coeff
        ],
        out_specs=pl.BlockSpec((B_TILE, O_PAD), lambda b: (b, 0)),
        compiler_params=pltpu.CompilerParams(
            dimension_semantics=("parallel",)),
    )(x, jnp.asarray(rep), jnp.asarray(mu_flat), jnp.asarray(inv2s2),
      jnp.asarray(sel), jnp.asarray(rule_mask), jnp.asarray(coeff_pad))
    return out[:, :n_out]


def anfis_ref(x, mu, sigma, mf_idx, coeff):
    """Pure-JAX reference mirroring the torch forward (gather + prod)."""
    fuzz = jnp.exp(-((x[:, :, None] - mu[None]) ** 2) / (2.0 * sigma[None] ** 2))
    ants = fuzz[:, jnp.arange(mu.shape[0])[None, :], mf_idx]     # (B, n_rules, n_in)
    raw = jnp.prod(ants, axis=2)
    w = raw / jnp.maximum(jnp.sum(jnp.abs(raw), axis=1, keepdims=True), 1e-12)
    return w @ coeff


if __name__ == "__main__":
    key = jax.random.PRNGKey(0)
    k1, k2, k3, k4 = jax.random.split(key, 4)
    x = jax.random.normal(k1, (BATCH, N_IN), jnp.float32)
    # Gaussian MF parameters (one (mu, sigma) per variable per MF).
    mu = jax.random.uniform(k2, (N_IN, N_MFS), jnp.float32, -1.5, 1.5)
    sigma = jax.random.uniform(k3, (N_IN, N_MFS), jnp.float32, 0.5, 1.5)
    # ConsequentLayer coeff shape is (n_rules, n_out, 1); __init__ zero-inits it,
    # which would give an all-zero output, so we use deterministic random values
    # (last axis of size 1 squeezed away).
    coeff = jax.random.normal(k4, (N_RULES, N_OUT), jnp.float32)
    # AntecedentLayer.mf_indices = itertools.product over MF counts.
    mf_idx = jnp.asarray(list(itertools.product(*[range(N_MFS)] * N_IN)),
                         dtype=jnp.int32)                        # (N_RULES, N_IN)

    y = anfis_forward(x, mu, sigma, mf_idx, coeff)
    y = jax.block_until_ready(y)

    y_ref = anfis_ref(x, mu, sigma, mf_idx, coeff)
    np.testing.assert_allclose(np.asarray(y), np.asarray(y_ref),
                               rtol=1e-5, atol=1e-5)
    # TODO(synk): fit_coeff (LSE hybrid learning) is training-time only and not
    # part of the forward pass, so it is intentionally not ported.
    print("KERNEL_OK")
</pallas_src>

<mosaic_0001>
module attributes {stable_mosaic.version = 11 : i64} {
  func.func @anfis_kernel(%arg0: i32, %arg1: memref<16x4xf32, #tpu.memory_space<vmem>>, %arg2: memref<4x128xf32, #tpu.memory_space<vmem>>, %arg3: memref<1x128xf32, #tpu.memory_space<vmem>>, %arg4: memref<1x128xf32, #tpu.memory_space<vmem>>, %arg5: memref<128x128xf32, #tpu.memory_space<vmem>>, %arg6: memref<1x128xf32, #tpu.memory_space<vmem>>, %arg7: memref<128x128xf32, #tpu.memory_space<vmem>>, %arg8: memref<16x128xf32, #tpu.memory_space<vmem>>) attributes {dimension_semantics = [#tpu.dimension_semantics<parallel>], iteration_bounds = array<i64: 1>, scalar_prefetch = 0 : i64, scratch_operands = 0 : i64, tpu.core_type = #tpu.core_type<tc>, window_params = [{transform_indices = @transform_0, window_bounds = array<i64: 16, 4>}, {pipeline_mode = #tpu.pipeline_mode<synchronous>, transform_indices = @transform_1, window_bounds = array<i64: 4, 128>}, {pipeline_mode = #tpu.pipeline_mode<synchronous>, transform_indices = @transform_2, window_bounds = array<i64: 1, 128>}, {pipeline_mode = #tpu.pipeline_mode<synchronous>, transform_indices = @transform_3, window_bounds = array<i64: 1, 128>}, {pipeline_mode = #tpu.pipeline_mode<synchronous>, transform_indices = @transform_4, window_bounds = array<i64: 128, 128>}, {pipeline_mode = #tpu.pipeline_mode<synchronous>, transform_indices = @transform_5, window_bounds = array<i64: 1, 128>}, {pipeline_mode = #tpu.pipeline_mode<synchronous>, transform_indices = @transform_6, window_bounds = array<i64: 128, 128>}, {transform_indices = @transform_7, window_bounds = array<i64: 16, 128>}]} {
    %c0 = arith.constant 0 : index
    %c0_0 = arith.constant 0 : index
    %0 = vector.load %arg1[%c0, %c0_0] : memref<16x4xf32, #tpu.memory_space<vmem>>, vector<16x4xf32>
    %c0_1 = arith.constant 0 : index
    %c0_2 = arith.constant 0 : index
    %1 = vector.load %arg2[%c0_1, %c0_2] : memref<4x128xf32, #tpu.memory_space<vmem>>, vector<4x128xf32>
    %cst = arith.constant dense<0.000000e+00> : vector<16x128xf32>
    %2 = tpu.matmul %0, %1, %cst {dimension_numbers = #tpu.dot_dimension_numbers<[1], [0], [0], [1], [0, 0, 1, 1], [], []>} : vector<16x4xf32>, vector<4x128xf32>, vector<16x128xf32> -> vector<16x128xf32>
    %c0_3 = arith.constant 0 : index
    %c0_4 = arith.constant 0 : index
    %3 = vector.load %arg3[%c0_3, %c0_4] : memref<1x128xf32, #tpu.memory_space<vmem>>, vector<1x128xf32>
    %4 = vector.broadcast %3 : vector<1x128xf32> to vector<16x128xf32>
    %5 = arith.subf %2, %4 : vector<16x128xf32>
    %6 = arith.mulf %5, %5 : vector<16x128xf32>
    %cst_5 = arith.constant 0.000000e+00 : f32
    %7 = vector.broadcast %cst_5 : f32 to vector<16x128xf32>
    %8 = arith.subf %7, %6 : vector<16x128xf32>
    %c0_6 = arith.constant 0 : index
    %c0_7 = arith.constant 0 : index
    %9 = vector.load %arg4[%c0_6, %c0_7] : memref<1x128xf32, #tpu.memory_space<vmem>>, vector<1x128xf32>
    %10 = vector.broadcast %9 : vector<1x128xf32> to vector<16x128xf32>
    %11 = arith.mulf %8, %10 : vector<16x128xf32>
    %c0_8 = arith.constant 0 : index
    %c0_9 = arith.constant 0 : index
    %12 = vector.load %arg5[%c0_8, %c0_9] : memref<128x128xf32, #tpu.memory_space<vmem>>, vector<128x128xf32>
    %cst_10 = arith.constant dense<0.000000e+00> : vector<16x128xf32>
    %13 = tpu.matmul %11, %12, %cst_10 {dimension_numbers = #tpu.dot_dimension_numbers<[1], [0], [0], [1], [0, 0, 1, 1], [], []>} : vector<16x128xf32>, vector<128x128xf32>, vector<16x128xf32> -> vector<16x128xf32>
    %14 = math.exp %13 : vector<16x128xf32>
    %c0_11 = arith.constant 0 : index
    %c0_12 = arith.constant 0 : index
    %15 = vector.load %arg6[%c0_11, %c0_12] : memref<1x128xf32, #tpu.memory_space<vmem>>, vector<1x128xf32>
    %16 = vector.broadcast %15 : vector<1x128xf32> to vector<16x128xf32>
    %17 = arith.mulf %14, %16 : vector<16x128xf32>
    %18 = math.absf %17 : vector<16x128xf32>
    %cst_13 = arith.constant dense<0.000000e+00> : vector<16xf32>
    %19 = vector.multi_reduction <add>, %18, %cst_13 [1] : vector<16x128xf32> to vector<16xf32>
    %20 = vector.shape_cast %19 : vector<16xf32> to vector<16x1xf32>
    %cst_14 = arith.constant 9.99999996E-13 : f32
    %21 = vector.broadcast %cst_14 : f32 to vector<16x1xf32>
    %22 = arith.maximumf %20, %21 : vector<16x1xf32>
    %23 = tpu.reciprocal %22 : vector<16x1xf32> -> vector<16x1xf32>
    %24 = vector.broadcast %23 : vector<16x1xf32> to vector<16x128xf32>
    %25 = arith.mulf %17, %24 : vector<16x128xf32>
    %c0_15 = arith.constant 0 : index
    %c0_16 = arith.constant 0 : index
    %26 = vector.load %arg7[%c0_15, %c0_16] : memref<128x128xf32, #tpu.memory_space<vmem>>, vector<128x128xf32>
    %cst_17 = arith.constant dense<0.000000e+00> : vector<16x128xf32>
    %27 = tpu.matmul %25, %26, %cst_17 {dimension_numbers = #tpu.dot_dimension_numbers<[1], [0], [0], [1], [0, 0, 1, 1], [], []>} : vector<16x128xf32>, vector<128x128xf32>, vector<16x128xf32> -> vector<16x128xf32>
    %c0_18 = arith.constant 0 : index
    %c0_19 = arith.constant 0 : index
    %28 = vector.load %arg8[%c0_18, %c0_19] : memref<16x128xf32, #tpu.memory_space<vmem>>, vector<16x128xf32>
    tpu.vector_store %arg8[%c0_18, %c0_19], %27 {strides = array<i32>} : memref<16x128xf32, #tpu.memory_space<vmem>>, vector<16x128xf32>,
    return
  }
  func.func @transform_0(%arg0: i32) -> (i32, i32) {
    %c0_i32 = arith.constant 0 : i32
    %c0_i32_0 = arith.constant 0 : i32
    return %arg0, %c0_i32 : i32, i32
  }
  func.func @transform_1(%arg0: i32) -> (i32, i32) {
    %c0_i32 = arith.constant 0 : i32
    %c0_i32_0 = arith.constant 0 : i32
    %c0_i32_1 = arith.constant 0 : i32
    return %c0_i32, %c0_i32_0 : i32, i32
  }
  func.func @transform_2(%arg0: i32) -> (i32, i32) {
    %c0_i32 = arith.constant 0 : i32
    %c0_i32_0 = arith.constant 0 : i32
    %c0_i32_1 = arith.constant 0 : i32
    return %c0_i32, %c0_i32_0 : i32, i32
  }
  func.func @transform_3(%arg0: i32) -> (i32, i32) {
    %c0_i32 = arith.constant 0 : i32
    %c0_i32_0 = arith.constant 0 : i32
    %c0_i32_1 = arith.constant 0 : i32
    return %c0_i32, %c0_i32_0 : i32, i32
  }
  func.func @transform_4(%arg0: i32) -> (i32, i32) {
    %c0_i32 = arith.constant 0 : i32
    %c0_i32_0 = arith.constant 0 : i32
    %c0_i32_1 = arith.constant 0 : i32
    return %c0_i32, %c0_i32_0 : i32, i32
  }
  func.func @transform_5(%arg0: i32) -> (i32, i32) {
    %c0_i32 = arith.constant 0 : i32
    %c0_i32_0 = arith.constant 0 : i32
    %c0_i32_1 = arith.constant 0 : i32
    return %c0_i32, %c0_i32_0 : i32, i32
  }
  func.func @transform_6(%arg0: i32) -> (i32, i32) {
    %c0_i32 = arith.constant 0 : i32
    %c0_i32_0 = arith.constant 0 : i32
    %c0_i32_1 = arith.constant 0 : i32
    return %c0_i32, %c0_i32_0 : i32, i32
  }
  func.func @transform_7(%arg0: i32) -> (i32, i32) {
    %c0_i32 = arith.constant 0 : i32
    %c0_i32_0 = arith.constant 0 : i32
    return %arg0, %c0_i32 : i32, i32
  }
}

</mosaic_0001>

<llo_original>
// kernel: tpu_custom_call.1
$region0: #{tpu_custom_call.1}
  #allocation0 [shape = 'u32[]', space=smem, size = 0x4, offset = 0x4, fixed_abs, tag = 'smem constant byte address 0x4 - core index']
  #allocation1 [shape = 'u32[72,128]{1,0:T(1,128)}', space=vmem, size = 0x9000, scoped, tag = 'internal scratch']
  %s0 = inlined_call_operand.vmem [shape: f32[16,4], index: 0, kind: input, shape index: {}]
  %s1 = inlined_call_operand.vmem [shape: f32[4,128], index: 1, kind: input, shape index: {}]
  %s2 = inlined_call_operand.vmem [shape: f32[1,128], index: 2, kind: input, shape index: {}]
  %s3 = inlined_call_operand.vmem [shape: f32[1,128], index: 3, kind: input, shape index: {}]
  %s4 = inlined_call_operand.hbm [shape: f32[128,128], index: 4, kind: input, shape index: {}]
  %s5 = inlined_call_operand.vmem [shape: f32[1,128], index: 5, kind: input, shape index: {}]
  %s6 = inlined_call_operand.hbm [shape: f32[128,128], index: 6, kind: input, shape index: {}]
  %s7 = inlined_call_operand.hbm [shape: f32[16,128], index: 7, kind: output, shape index: {}]
  %s8 = sld [smem:[#allocation0]]
  $region46: #{tpu_custom_call.1} parent=0
    _
  %s10 = ssub.s32 1, %s8
  %s11 = scalar_select 0, %s10, %s8
  $region1: #{tpu_custom_call.1} parent=0
    #allocation2 [shape = 'u8[65536]{0}', space=vmem, size = 0x10000, scoped, tag = 'input window, operand 4, single buffered']
    #allocation3 [shape = 's32[1]{0}', space=sflag, size = 0x4, scoped, tag = 'scoped memory for tpu_custom_call.1']
    #allocation4 [shape = 's32[1]{0}', space=sflag, size = 0x4, scoped, tag = 'scoped memory for tpu_custom_call.1']
    #allocation5 [shape = 'u8[65536]{0}', space=vmem, size = 0x10000, scoped, tag = 'input window, operand 6, single buffered']
    #allocation6 [shape = 's32[1]{0}', space=sflag, size = 0x4, scoped, tag = 'scoped memory for tpu_custom_call.1']
    #allocation7 [shape = 'u8[8192]{0}', space=vmem, size = 0x2000, scoped, tag = 'output window, operand 0, single buffered']
    %12 = vsyncpa [#allocation3], 0
    %13 = vsyncpa [#allocation6], 0
    %14 = vsyncpa [#allocation4], 0
    // Predicated region
    $region2: #{tpu_custom_call.1} parent=1 // pred_check
      _
    $region3: #{tpu_custom_call.1} parent=1 // pred_check_branch
      %16 = sbr.rel (0) target = $region5
    $region4: #{tpu_custom_call.1} parent=1 // pred_region
      _
    $region5: #{tpu_custom_call.1} parent=1 // pred_fallthru
      _
    // Predicated region
    $region6: #{tpu_custom_call.1} parent=1 // pred_check
      _
    $region7: #{tpu_custom_call.1} parent=1 // pred_check_branch
      %18 = sbr.rel (0) target = $region9
    $region8: #{tpu_custom_call.1} parent=1 // pred_region
      _
    $region9: #{tpu_custom_call.1} parent=1 // pred_fallthru
      _
    // Predicated region
    $region10: #{tpu_custom_call.1} parent=1 // pred_check
      _
    $region11: #{tpu_custom_call.1} parent=1 // pred_check_branch
      %20 = sbr.rel (0) target = $region13
    $region12: #{tpu_custom_call.1} parent=1 // pred_region
      _
    $region13: #{tpu_custom_call.1} parent=1 // pred_fallthru
      _
    // Predicated region
    $region14: #{tpu_custom_call.1} parent=1 // pred_check
      _
    $region15: #{tpu_custom_call.1} parent=1 // pred_check_branch
      %22 = sbr.rel (0) target = $region17
    $region16: #{tpu_custom_call.1} parent=1 // pred_region
      _
    $region17: #{tpu_custom_call.1} parent=1 // pred_fallthru
      _
    // Predicated region
    $region18: #{tpu_custom_call.1} parent=1 // pred_check
      _
    $region19: #{tpu_custom_call.1} parent=1 // pred_check_branch
      %24 = sbr.rel (0) target = $region21
    $region20: #{tpu_custom_call.1} parent=1 // pred_region
      %26 = vsyncadd [#allocation3], 0
      %s27 = sshll.u32 %s4, 4
      %s28 = int_to_ptr.hbm [resolvable:$true] %s27
      %s29 = sshll.u32 [#allocation2], 4
      %s30 = int_to_ptr.vmem [resolvable:$true] %s29
      %35 = dma.hbm_to_vmem [thread:$0]  %s28, 2048, %s30, [#allocation3], 128, 128, 8
    $region21: #{tpu_custom_call.1} parent=1 // pred_fallthru
      _
    // Predicated region
    $region22: #{tpu_custom_call.1} parent=1 // pred_check
      _
    $region23: #{tpu_custom_call.1} parent=1 // pred_check_branch
      %37 = sbr.rel (0) target = $region25
    $region24: #{tpu_custom_call.1} parent=1 // pred_region
      _
    $region25: #{tpu_custom_call.1} parent=1 // pred_fallthru
      _
    // Predicated region
    $region26: #{tpu_custom_call.1} parent=1 // pred_check
      _
    $region27: #{tpu_custom_call.1} parent=1 // pred_check_branch
      %39 = sbr.rel (0) target = $region29
    $region28: #{tpu_custom_call.1} parent=1 // pred_region
      %41 = vsyncadd [#allocation6], 0
      %s42 = sshll.u32 %s6, 4
      %s43 = int_to_ptr.hbm [resolvable:$true] %s42
      %s44 = sshll.u32 [#allocation5], 4
      %s45 = int_to_ptr.vmem [resolvable:$true] %s44
      %50 = dma.hbm_to_vmem [thread:$0]  %s43, 2048, %s45, [#allocation6], 128, 128, 8
    $region29: #{tpu_custom_call.1} parent=1 // pred_fallthru
      _
    // Predicated region
    $region30: #{tpu_custom_call.1} parent=1 // pred_check
      _
    $region31: #{tpu_custom_call.1} parent=1 // pred_check_branch
      %52 = sbr.rel (0) target = $region33
    $region32: #{tpu_custom_call.1} parent=1 // pred_region
      %54 = dma.done [#allocation3], 2048
    $region33: #{tpu_custom_call.1} parent=1 // pred_fallthru
      _
    // Predicated region
    $region34: #{tpu_custom_call.1} parent=1 // pred_check
      _
    $region35: #{tpu_custom_call.1} parent=1 // pred_check_branch
      %56 = sbr.rel (0) target = $region37
    $region36: #{tpu_custom_call.1} parent=1 // pred_region
      %58 = dma.done [#allocation6], 2048
    $region37: #{tpu_custom_call.1} parent=1 // pred_fallthru
      _
    %v59 = vld [vmem:[%s0] sm:$0xff]
    %v60 = vld [vmem:[%s0 + $0x8] sm:$0xff]
    %v61 = vld [vmem:[%s1] sm:$0xf]
    %vm62 = vcmask 31744
    %v64 = vsel %vm62, %v59, 0
    %v67 = vsel %vm62, %v60, 0
    %vm69 = vcmask 1043456
    %v71 = vsel %vm69, %v61, 0
    %73 = vmatpush.msra.mxu0 0.0
    %74 = vmatpush.msra.mxu0 0.0
    %75 = vmatpush.msra.mxu0 0.0
    %76 = vmatpush.msra.mxu0 0.0
    %77 = vmatpush.msra.mxu0 0.0
    %78 = vmatpush.msra.mxu0 0.0
    %79 = vmatpush.msra.mxu0 0.0
    %80 = vmatpush.msra.mxu0 0.0
    %81 = vmatpush.msra.mxu0 0.0
    %82 = vmatpush.msra.mxu0 0.0
    %83 = vmatpush.msra.mxu0 0.0
    %84 = vmatpush.msra.mxu0 0.0
    %85 = vmatpush.msra.mxu0 0.0
    %86 = vmatpush.msra.mxu0 0.0
    %87 = vmatpush.msra.mxu0 0.0
    %88 = vmatpush.msra.mxu0 %v71
    %89 = vmatmul.f32.gmra.mxu0 %v64
    %v90 = vpop.f32.mrf.mxu0
    %v91 = vadd.f32 0.0, %v90
    %92 = vmatmul.f32.gmra.mxu0 %v67
    %v93 = vpop.f32.mrf.mxu0
    %v94 = vadd.f32 0.0, %v93
    %95 = vdwg.mxu0
    %v96 = vld [vmem:[%s2] sm:$0x1]
    %v98 = vperm.slane %v96, 0
    %v100 = vsub.f32 %v91, %v98
    %v101 = vsub.f32 %v94, %v98
    %v102 = vmul.f32 %v100, %v100
    %v103 = vmul.f32 %v101, %v101
    %v104 = vsub.f32 0.0, %v102
    %v105 = vsub.f32 0.0, %v103
    %v106 = vld [vmem:[%s3] sm:$0x1]
    %v108 = vperm.slane %v106, 0
    %v110 = vmul.f32 %v104, %v108
    %v111 = vmul.f32 %v105, %v108
    %v112 = vld [vmem:[#allocation2] sm:$0xff]
    %v113 = vld [vmem:[#allocation2 + $0x8] sm:$0xff]
    %v114 = vld [vmem:[#allocation2 + $0x10] sm:$0xff]
    %v115 = vld [vmem:[#allocation2 + $0x18] sm:$0xff]
    %v116 = vld [vmem:[#allocation2 + $0x20] sm:$0xff]
    %v117 = vld [vmem:[#allocation2 + $0x28] sm:$0xff]
    %v118 = vld [vmem:[#allocation2 + $0x30] sm:$0xff]
    %v119 = vld [vmem:[#allocation2 + $0x38] sm:$0xff]
    %v120 = vld [vmem:[#allocation2 + $0x40] sm:$0xff]
    %v121 = vld [vmem:[#allocation2 + $0x48] sm:$0xff]
    %v122 = vld [vmem:[#allocation2 + $0x50] sm:$0xff]
    %v123 = vld [vmem:[#allocation2 + $0x58] sm:$0xff]
    %v124 = vld [vmem:[#allocation2 + $0x60] sm:$0xff]
    %v125 = vld [vmem:[#allocation2 + $0x68] sm:$0xff]
    %v126 = vld [vmem:[#allocation2 + $0x70] sm:$0xff]
    %v127 = vld [vmem:[#allocation2 + $0x78] sm:$0xff]
    %128 = vmatpush.msra.mxu0 %v127
    %129 = vmatpush.msra.mxu0 %v126
    %130 = vmatpush.msra.mxu0 %v125
    %131 = vmatpush.msra.mxu0 %v124
    %132 = vmatpush.msra.mxu0 %v123
    %133 = vmatpush.msra.mxu0 %v122
    %134 = vmatpush.msra.mxu0 %v121
    %135 = vmatpush.msra.mxu0 %v120
    %136 = vmatpush.msra.mxu0 %v119
    %137 = vmatpush.msra.mxu0 %v118
    %138 = vmatpush.msra.mxu0 %v117
    %139 = vmatpush.msra.mxu0 %v116
    %140 = vmatpush.msra.mxu0 %v115
    %141 = vmatpush.msra.mxu0 %v114
    %142 = vmatpush.msra.mxu0 %v113
    %143 = vmatpush.msra.mxu0 %v112
    %144 = vmatmul.f32.gmra.mxu0 %v110
    %v145 = vpop.f32.mrf.mxu0
    %v146 = vadd.f32 0.0, %v145
    %147 = vmatmul.f32.gmra.mxu0 %v111
    %v148 = vpop.f32.mrf.mxu0
    %v149 = vadd.f32 0.0, %v148
    %150 = vdwg.mxu0
    %v151 = vmul.f32 %v146, 1.442695
    %v152 = vpow.pop %v151
    %v153 = vmul.f32 %v149, 1.442695
    %v154 = vpow.pop %v153
    %v155 = vld [vmem:[%s5] sm:$0x1]
    %v157 = vperm.slane %v155, 0
    %v159 = vmul.f32 %v152, %v157
    %v160 = vmul.f32 %v154, %v157
    %v161 = vand.u32 2147483647, %v159
    %v162 = vand.u32 2147483647, %v160
    %163 = vadd.xlane.f32.xlu0 %v161
    %v164 = vpop.xlane.xlu0 %163
    %165 = vadd.xlane.f32.xlu0 %v162
    %v166 = vpop.xlane.xlu0 %165
    %v167 = vmax.f32 %v164, 1e-12
    %v168 = vmax.f32 %v166, 1e-12
    %v169 = vrcp.pop %v167
    %v170 = vmul.f32 %v167, %v169
    %v171 = vsub.f32 1.0, %v170
    %v172 = vmul.f32 %v169, %v171
    %v173 = vadd.f32 %v169, %v172
    %vm174 = vweird.f32 %v167
    %vm175 = vweird.f32 %v169
    %vm176 = vmor %vm174, %vm175
    %v177 = vsel %vm176, %v169, %v173
    %v178 = vand.u32 2147483647, %v167
    %vm179 = vcmp.eq.f32.partialorder %v178, 8.507059e+37
    %v180 = vand.u32 %v167, 2147483648
    %v181 = vor.u32 1.1754944e-38, %v180
    %v182 = vsel %vm179, %v181, %v177
    %v183 = vrcp.pop %v168
    %v184 = vmul.f32 %v168, %v183
    %v185 = vsub.f32 1.0, %v184
    %v186 = vmul.f32 %v183, %v185
    %v187 = vadd.f32 %v183, %v186
    %vm188 = vweird.f32 %v168
    %vm189 = vweird.f32 %v183
    %vm190 = vmor %vm188, %vm189
    %v191 = vsel %vm190, %v183, %v187
    %v192 = vand.u32 2147483647, %v168
    %vm193 = vcmp.eq.f32.partialorder %v192, 8.507059e+37
    %v194 = vand.u32 %v168, 2147483648
    %v195 = vor.u32 1.1754944e-38, %v194
    %v196 = vsel %vm193, %v195, %v191
    %v197 = vmul.f32 %v159, %v182
    %v198 = vmul.f32 %v160, %v196
    %v199 = vld [vmem:[#allocation5] sm:$0xff]
    %v200 = vld [vmem:[#allocation5 + $0x8] sm:$0xff]
    %v201 = vld [vmem:[#allocation5 + $0x10] sm:$0xff]
    %v202 = vld [vmem:[#allocation5 + $0x18] sm:$0xff]
    %v203 = vld [vmem:[#allocation5 + $0x20] sm:$0xff]
    %v204 = vld [vmem:[#allocation5 + $0x28] sm:$0xff]
    %v205 = vld [vmem:[#allocation5 + $0x30] sm:$0xff]
    %v206 = vld [vmem:[#allocation5 + $0x38] sm:$0xff]
    %v207 = vld [vmem:[#allocation5 + $0x40] sm:$0xff]
    %v208 = vld [vmem:[#allocation5 + $0x48] sm:$0xff]
    %v209 = vld [vmem:[#allocation5 + $0x50] sm:$0xff]
    %v210 = vld [vmem:[#allocation5 + $0x58] sm:$0xff]
    %v211 = vld [vmem:[#allocation5 + $0x60] sm:$0xff]
    %v212 = vld [vmem:[#allocation5 + $0x68] sm:$0xff]
    %v213 = vld [vmem:[#allocation5 + $0x70] sm:$0xff]
    %v214 = vld [vmem:[#allocation5 + $0x78] sm:$0xff]
    %215 = vmatpush.msra.mxu0 %v214
    %216 = vmatpush.msra.mxu0 %v213
    %217 = vmatpush.msra.mxu0 %v212
    %218 = vmatpush.msra.mxu0 %v211
    %219 = vmatpush.msra.mxu0 %v210
    %220 = vmatpush.msra.mxu0 %v209
    %221 = vmatpush.msra.mxu0 %v208
    %222 = vmatpush.msra.mxu0 %v207
    %223 = vmatpush.msra.mxu0 %v206
    %224 = vmatpush.msra.mxu0 %v205
    %225 = vmatpush.msra.mxu0 %v204
    %226 = vmatpush.msra.mxu0 %v203
    %227 = vmatpush.msra.mxu0 %v202
    %228 = vmatpush.msra.mxu0 %v201
    %229 = vmatpush.msra.mxu0 %v200
    %230 = vmatpush.msra.mxu0 %v199
    %231 = vmatmul.f32.gmra.mxu0 %v197
    %v232 = vpop.f32.mrf.mxu0
    %v233 = vadd.f32 0.0, %v232
    %234 = vmatmul.f32.gmra.mxu0 %v198
    %v235 = vpop.f32.mrf.mxu0
    %v236 = vadd.f32 0.0, %v235
    %237 = vdwg.mxu0
    %238 = vst [vmem:[#allocation7] sm:$0xff] %v233
    %239 = vst [vmem:[#allocation7 + $0x8] sm:$0xff] %v236
    // Predicated region
    $region38: #{tpu_custom_call.1} parent=1 // pred_check
      _
    $region39: #{tpu_custom_call.1} parent=1 // pred_check_branch
      %241 = sbr.rel (0) target = $region41
    $region40: #{tpu_custom_call.1} parent=1 // pred_region
      %243 = vsyncadd [#allocation4], 0
      %s244 = sshll.u32 [#allocation7], 4
      %s245 = int_to_ptr.vmem [resolvable:$true] %s244
      %s246 = sshll.u32 %s7, 4
      %s247 = int_to_ptr.hbm [resolvable:$true] %s246
      %252 = dma.vmem_to_hbm [thread:$0]  %s245, 256, %s247, [#allocation4], 128, 128, 8
    $region41: #{tpu_custom_call.1} parent=1 // pred_fallthru
      _
    // Predicated region
    $region42: #{tpu_custom_call.1} parent=1 // pred_check
      _
    $region43: #{tpu_custom_call.1} parent=1 // pred_check_branch
      %254 = sbr.rel (0) target = $region45
    $region44: #{tpu_custom_call.1} parent=1 // pred_region
      %256 = dma.done [#allocation4], 256
    $region45: #{tpu_custom_call.1} parent=1 // pred_fallthru
      _
    %257 = vsyncpa [#allocation3], 1
    %258 = vsyncpa [#allocation6], 1
    %259 = vsyncpa [#allocation4], 1

</llo_original>
